<compile_context>
chip_gen: v5e
topology: v5e:2x2
jax: 0.10.0
libtpu: 0.0.40
codegen_flags: <defaults>
</compile_context>

<pallas_src>
import jax
import jax.numpy as jnp
from jax.experimental import pallas as pl
from jax.experimental.pallas import tpu as pltpu


def _keypoint_loss_kernel(data_ref, area_ref, sig_ref, out_ref):
    """data_ref: (2*K, TN) = [d planes ; mask planes] (keypoints x instances).
    area_ref: (1, TN); sig_ref: (K, 1); out_ref: (1, 2, 8, 128) partials."""
    f32 = jnp.float32
    K = sig_ref.shape[0]

    d = data_ref[pl.ds(0, K), :].astype(f32)        # (K, TN) squared distances
    mask = data_ref[pl.ds(K, K), :].astype(f32)     # (K, TN) keypoint mask

    # e = d / (2*sigma)^2 / (area + 1e-9) / 2  ==  d * inv_sig * inv_area
    # Reciprocals touch only O(K + TN) elements (exact, not approx, to stay
    # numerically close to the chained-divide reference).
    sig = sig_ref[...].astype(f32)                  # (K, 1)
    area = area_ref[...].astype(f32)                # (1, TN)
    inv_sig = pl.reciprocal(8.0 * sig * sig)        # 1 / ((2*sig)^2 * 2)
    inv_area = pl.reciprocal(area + 1e-9)
    e = d * inv_sig * inv_area                      # two broadcast multiplies

    term = (1.0 - jnp.exp(-e)) * mask
    num = jnp.sum(term)                             # partial numerator
    cnt = jnp.sum((mask != 0.0).astype(f32))        # partial nonzero count

    # Lane-dense partial writeback (one unmasked (8,128) store per quantity).
    out_ref[0, 0] = jnp.full((8, 128), num, dtype=f32)
    out_ref[0, 1] = jnp.full((8, 128), cnt, dtype=f32)


def _round_up(x, m):
    return ((x + m - 1) // m) * m


def keypoint_loss(pred_kpts, gt_kpts, kpt_mask, area, sigmas, *, tile_n=4096):
    """pred_kpts, gt_kpts: (N, K, 2+); kpt_mask: (N, K); area: (N, 1); sigmas: (K,)"""
    N, K = kpt_mask.shape
    f32 = jnp.float32

    # Per-element geometry fuses with the slicing in XLA; only [d, mask] is
    # shipped to the kernel (2 planes instead of 5).
    dx = pred_kpts[..., 0] - gt_kpts[..., 0]
    dy = pred_kpts[..., 1] - gt_kpts[..., 1]
    d = (dx * dx + dy * dy).astype(f32)                     # (N, K)
    mask = kpt_mask.astype(f32)                             # (N, K) full precision

    # Flattened 2-D slab, instances on the lane (last) axis:
    #   rows [0, K)   -> d planes
    #   rows [K, 2K)  -> mask planes
    data = jnp.concatenate([d.T, mask.T], axis=0)           # (2*K, N) f32
    area_row = area.reshape(1, N).astype(f32)               # (1, N)
    sig_col = sigmas.reshape(K, 1).astype(f32)              # (K, 1)

    # Tiling over instances. When N is large enough, use lane-dense tiles
    # (multiples of 128) and at least two of them so the "parallel" grid axis
    # can shard across both TensorCores on v7x. Padded columns have d == 0 and
    # mask == 0, so the folded loss is unaffected.
    if N >= 256:
        tn = min(tile_n, _round_up(-(-N // 2), 128))        # >= 2 tiles, <= tile_n
        n_pad = _round_up(N, tn)
    else:
        tn = N                                               # single tile, full extent
        n_pad = N
    if n_pad != N:
        data = jnp.pad(data, ((0, 0), (0, n_pad - N)))
        area_row = jnp.pad(area_row, ((0, 0), (0, n_pad - N)))
    n_tiles = n_pad // tn

    partials = pl.pallas_call(
        _keypoint_loss_kernel,
        out_shape=jax.ShapeDtypeStruct((n_tiles, 2, 8, 128), jnp.float32),
        grid=(n_tiles,),
        in_specs=[
            pl.BlockSpec((2 * K, tn), lambda i: (0, i)),     # stacked slab: 1 DMA/tile
            pl.BlockSpec((1, tn), lambda i: (0, i)),         # area row slice
            pl.BlockSpec((K, 1), lambda i: (0, 0)),          # sigmas (resident)
        ],
        out_specs=pl.BlockSpec((1, 2, 8, 128), lambda i: (i, 0, 0, 0)),
        compiler_params=pltpu.CompilerParams(
            dimension_semantics=("parallel",)),              # independent tiles -> megacore
    )(data, area_row, sig_col)

    # Folded loss: factor * mean == sum(term) / (nonzero + 1e-9).
    num = jnp.sum(partials[:, 0, 0, 0])
    cnt = jnp.sum(partials[:, 1, 0, 0])
    return num / (cnt + 1e-9)


def keypoint_loss_ref(pred_kpts, gt_kpts, kpt_mask, area, sigmas):
    """Pure-JAX reference matching the PyTorch module exactly."""
    d = (pred_kpts[..., 0] - gt_kpts[..., 0]) ** 2 + (pred_kpts[..., 1] - gt_kpts[..., 1]) ** 2
    kpt_loss_factor = (jnp.sum(kpt_mask != 0) + jnp.sum(kpt_mask == 0)) / (jnp.sum(kpt_mask != 0) + 1e-9)
    e = d / (2 * sigmas) ** 2 / (area + 1e-9) / 2
    return kpt_loss_factor * jnp.mean((1 - jnp.exp(-e)) * kpt_mask)


def _make_inputs(key, N, K):
    k1, k2, k3, k4 = jax.random.split(key, 4)
    pred_kpts = jax.random.normal(k1, (N, K, 2), dtype=jnp.float32) * 4.0
    gt_kpts = jax.random.normal(k2, (N, K, 2), dtype=jnp.float32) * 4.0
    kpt_mask = (jax.random.uniform(k3, (N, K)) > 0.3).astype(jnp.float32)
    area = jax.random.uniform(k4, (N, 1), minval=10.0, maxval=100.0, dtype=jnp.float32)
    sigmas = jnp.full((K,), 1.0 / K, dtype=jnp.float32)  # module __init__ argument
    return pred_kpts, gt_kpts, kpt_mask, area, sigmas


if __name__ == "__main__":
    key = jax.random.PRNGKey(0)
    k_small, k_big = jax.random.split(key)

    # Small case: 8 instances x 16 keypoints (single-tile path).
    args = _make_inputs(k_small, N=8, K=16)
    loss = jax.block_until_ready(keypoint_loss(*args))
    ref = keypoint_loss_ref(*args)
    assert jnp.allclose(loss, ref, rtol=1e-5, atol=1e-6), (loss, ref)

    # Slightly larger case exercising the multi-tile (padded, >=2 tiles) path.
    args = _make_inputs(k_big, N=384, K=16)
    loss = jax.block_until_ready(keypoint_loss(*args, tile_n=4096))
    ref = keypoint_loss_ref(*args)
    assert jnp.allclose(loss, ref, rtol=1e-5, atol=1e-6), (loss, ref)

    print("KERNEL_OK")
</pallas_src>

<mosaic_0001>
module attributes {stable_mosaic.version = 11 : i64} {
  func.func @_keypoint_loss_kernel(%arg0: i32, %arg1: memref<32x8xf32, #tpu.memory_space<vmem>>, %arg2: memref<1x8xf32, #tpu.memory_space<vmem>>, %arg3: memref<16x1xf32, #tpu.memory_space<vmem>>, %arg4: memref<1x2x8x128xf32, #tpu.memory_space<vmem>>) attributes {dimension_semantics = [#tpu.dimension_semantics<parallel>], iteration_bounds = array<i64: 1>, scalar_prefetch = 0 : i64, scratch_operands = 0 : i64, tpu.core_type = #tpu.core_type<tc>, window_params = [{transform_indices = @transform_0, window_bounds = array<i64: 32, 8>}, {transform_indices = @transform_1, window_bounds = array<i64: 1, 8>}, {pipeline_mode = #tpu.pipeline_mode<synchronous>, transform_indices = @transform_2, window_bounds = array<i64: 16, 1>}, {transform_indices = @transform_3, window_bounds = array<i64: 1, 2, 8, 128>}]} {
    %c0 = arith.constant 0 : index
    %c0_0 = arith.constant 0 : index
    %0 = vector.load %arg1[%c0, %c0_0] : memref<32x8xf32, #tpu.memory_space<vmem>>, vector<16x8xf32>
    %c16 = arith.constant 16 : index
    %c0_1 = arith.constant 0 : index
    %1 = vector.load %arg1[%c16, %c0_1] : memref<32x8xf32, #tpu.memory_space<vmem>>, vector<16x8xf32>
    %c0_2 = arith.constant 0 : index
    %c0_3 = arith.constant 0 : index
    %2 = vector.load %arg3[%c0_2, %c0_3] : memref<16x1xf32, #tpu.memory_space<vmem>>, vector<16x1xf32>
    %c0_4 = arith.constant 0 : index
    %c0_5 = arith.constant 0 : index
    %3 = vector.load %arg2[%c0_4, %c0_5] : memref<1x8xf32, #tpu.memory_space<vmem>>, vector<1x8xf32>
    %cst = arith.constant 8.000000e+00 : f32
    %4 = vector.broadcast %cst : f32 to vector<16x1xf32>
    %5 = arith.mulf %4, %2 : vector<16x1xf32>
    %6 = arith.mulf %5, %2 : vector<16x1xf32>
    %7 = tpu.reciprocal %6 : vector<16x1xf32> -> vector<16x1xf32>
    %cst_6 = arith.constant 9.99999971E-10 : f32
    %8 = vector.broadcast %cst_6 : f32 to vector<1x8xf32>
    %9 = arith.addf %3, %8 : vector<1x8xf32>
    %10 = tpu.reciprocal %9 : vector<1x8xf32> -> vector<1x8xf32>
    %11 = vector.broadcast %7 : vector<16x1xf32> to vector<16x8xf32>
    %12 = arith.mulf %0, %11 : vector<16x8xf32>
    %13 = vector.broadcast %10 : vector<1x8xf32> to vector<16x8xf32>
    %14 = arith.mulf %12, %13 : vector<16x8xf32>
    %cst_7 = arith.constant 0.000000e+00 : f32
    %15 = vector.broadcast %cst_7 : f32 to vector<16x8xf32>
    %16 = arith.subf %15, %14 : vector<16x8xf32>
    %17 = math.exp %16 : vector<16x8xf32>
    %cst_8 = arith.constant 1.000000e+00 : f32
    %18 = vector.broadcast %cst_8 : f32 to vector<16x8xf32>
    %19 = arith.subf %18, %17 : vector<16x8xf32>
    %20 = arith.mulf %19, %1 : vector<16x8xf32>
    %21 = vector.shape_cast %20 : vector<16x8xf32> to vector<1x16x8xf32>
    %cst_9 = arith.constant dense<0.000000e+00> : vector<1xf32>
    %22 = vector.multi_reduction <add>, %21, %cst_9 [1, 2] : vector<1x16x8xf32> to vector<1xf32>
    %23 = vector.shape_cast %22 : vector<1xf32> to vector<1x1x1xf32>
    %24 = vector.extract %23[0, 0, 0] : f32 from vector<1x1x1xf32>
    %cst_10 = arith.constant 0.000000e+00 : f32
    %25 = vector.broadcast %cst_10 : f32 to vector<16x8xf32>
    %26 = arith.cmpf one, %1, %25 : vector<16x8xf32>
    %27 = arith.extui %26 : vector<16x8xi1> to vector<16x8xi32>
    %28 = arith.sitofp %27 : vector<16x8xi32> to vector<16x8xf32>
    %29 = vector.shape_cast %28 : vector<16x8xf32> to vector<1x16x8xf32>
    %cst_11 = arith.constant dense<0.000000e+00> : vector<1xf32>
    %30 = vector.multi_reduction <add>, %29, %cst_11 [1, 2] : vector<1x16x8xf32> to vector<1xf32>
    %31 = vector.shape_cast %30 : vector<1xf32> to vector<1x1x1xf32>
    %32 = vector.extract %31[0, 0, 0] : f32 from vector<1x1x1xf32>
    %33 = vector.broadcast %24 : f32 to vector<8x128xf32>
    %c0_12 = arith.constant 0 : index
    %c0_13 = arith.constant 0 : index
    %c0_14 = arith.constant 0 : index
    %c0_15 = arith.constant 0 : index
    %34 = vector.load %arg4[%c0_12, %c0_13, %c0_14, %c0_15] : memref<1x2x8x128xf32, #tpu.memory_space<vmem>>, vector<1x1x8x128xf32>
    %35 = vector.shape_cast %34 : vector<1x1x8x128xf32> to vector<8x128xf32>
    %36 = vector.shape_cast %33 : vector<8x128xf32> to vector<1x1x8x128xf32>
    tpu.vector_store %arg4[%c0_12, %c0_13, %c0_14, %c0_15], %36 {strides = array<i32>} : memref<1x2x8x128xf32, #tpu.memory_space<vmem>>, vector<1x1x8x128xf32>,
    %37 = vector.broadcast %32 : f32 to vector<8x128xf32>
    %c0_16 = arith.constant 0 : index
    %c1 = arith.constant 1 : index
    %c0_17 = arith.constant 0 : index
    %c0_18 = arith.constant 0 : index
    %38 = vector.load %arg4[%c0_16, %c1, %c0_17, %c0_18] : memref<1x2x8x128xf32, #tpu.memory_space<vmem>>, vector<1x1x8x128xf32>
    %39 = vector.shape_cast %38 : vector<1x1x8x128xf32> to vector<8x128xf32>
    %40 = vector.shape_cast %37 : vector<8x128xf32> to vector<1x1x8x128xf32>
    tpu.vector_store %arg4[%c0_16, %c1, %c0_17, %c0_18], %40 {strides = array<i32>} : memref<1x2x8x128xf32, #tpu.memory_space<vmem>>, vector<1x1x8x128xf32>,
    return
  }
  func.func @transform_0(%arg0: i32) -> (i32, i32) {
    %c0_i32 = arith.constant 0 : i32
    %c0_i32_0 = arith.constant 0 : i32
    return %c0_i32, %arg0 : i32, i32
  }
  func.func @transform_1(%arg0: i32) -> (i32, i32) {
    %c0_i32 = arith.constant 0 : i32
    %c0_i32_0 = arith.constant 0 : i32
    return %c0_i32, %arg0 : i32, i32
  }
  func.func @transform_2(%arg0: i32) -> (i32, i32) {
    %c0_i32 = arith.constant 0 : i32
    %c0_i32_0 = arith.constant 0 : i32
    %c0_i32_1 = arith.constant 0 : i32
    return %c0_i32, %c0_i32_0 : i32, i32
  }
  func.func @transform_3(%arg0: i32) -> (i32, i32, i32, i32) {
    %c0_i32 = arith.constant 0 : i32
    %c0_i32_0 = arith.constant 0 : i32
    %c0_i32_1 = arith.constant 0 : i32
    %c0_i32_2 = arith.constant 0 : i32
    return %arg0, %c0_i32, %c0_i32_0, %c0_i32_1 : i32, i32, i32, i32
  }
}

</mosaic_0001>

<llo_original>
// kernel: tpu_custom_call.1
$region0: #{tpu_custom_call.1}
  #allocation0 [shape = 'u32[]', space=smem, size = 0x4, offset = 0x4, fixed_abs, tag = 'smem constant byte address 0x4 - core index']
  #allocation1 [shape = 'u32[72,128]{1,0:T(1,128)}', space=vmem, size = 0x9000, scoped, tag = 'internal scratch']
  %s0 = inlined_call_operand.vmem [shape: f32[32,8], index: 0, kind: input, shape index: {}]
  %s1 = inlined_call_operand.vmem [shape: f32[1,8], index: 1, kind: input, shape index: {}]
  %s2 = inlined_call_operand.vmem [shape: f32[16,1], index: 2, kind: input, shape index: {}]
  %s3 = inlined_call_operand.hbm [shape: f32[1,2,8,128], index: 3, kind: output, shape index: {}]
  %s4 = sld [smem:[#allocation0]]
  $region22: #{tpu_custom_call.1} parent=0
    _
  %s6 = ssub.s32 1, %s4
  %s7 = scalar_select 0, %s6, %s4
  $region1: #{tpu_custom_call.1} parent=0
    #allocation2 [shape = 'u8[8192]{0}', space=vmem, size = 0x2000, scoped, tag = 'output window, operand 0, single buffered']
    #allocation3 [shape = 's32[1]{0}', space=sflag, size = 0x4, scoped, tag = 'scoped memory for tpu_custom_call.1']
    %8 = vsyncpa [#allocation3], 0
    // Predicated region
    $region2: #{tpu_custom_call.1} parent=1 // pred_check
      _
    $region3: #{tpu_custom_call.1} parent=1 // pred_check_branch
      %10 = sbr.rel (0) target = $region5
    $region4: #{tpu_custom_call.1} parent=1 // pred_region
      _
    $region5: #{tpu_custom_call.1} parent=1 // pred_fallthru
      _
    // Predicated region
    $region6: #{tpu_custom_call.1} parent=1 // pred_check
      _
    $region7: #{tpu_custom_call.1} parent=1 // pred_check_branch
      %12 = sbr.rel (0) target = $region9
    $region8: #{tpu_custom_call.1} parent=1 // pred_region
      _
    $region9: #{tpu_custom_call.1} parent=1 // pred_fallthru
      _
    // Predicated region
    $region10: #{tpu_custom_call.1} parent=1 // pred_check
      _
    $region11: #{tpu_custom_call.1} parent=1 // pred_check_branch
      %14 = sbr.rel (0) target = $region13
    $region12: #{tpu_custom_call.1} parent=1 // pred_region
      _
    $region13: #{tpu_custom_call.1} parent=1 // pred_fallthru
      _
    %v15 = vld [vmem:[%s0] sm:$0xff]
    %v16 = vld [vmem:[%s0 + $0x8] sm:$0xff]
    %v17 = vld [vmem:[%s0 + $0x10] sm:$0xff]
    %v18 = vld [vmem:[%s0 + $0x18] sm:$0xff]
    %v19 = vld [vmem:[%s2] sm:$0xff]
    %v20 = vld [vmem:[%s2 + $0x8] sm:$0xff]
    %v21 = vld [vmem:[%s1] sm:$0x1]
    %v22 = vmul.f32 %v19, 8.0
    %v23 = vmul.f32 %v20, 8.0
    %v24 = vmul.f32 %v22, %v19
    %v25 = vmul.f32 %v23, %v20
    %v26 = vrcp.pop %v24
    %v27 = vmul.f32 %v24, %v26
    %v28 = vsub.f32 1.0, %v27
    %v29 = vmul.f32 %v26, %v28
    %v30 = vadd.f32 %v26, %v29
    %vm31 = vweird.f32 %v24
    %vm32 = vweird.f32 %v26
    %vm33 = vmor %vm31, %vm32
    %v34 = vsel %vm33, %v26, %v30
    %v35 = vand.u32 2147483647, %v24
    %vm36 = vcmp.eq.f32.partialorder %v35, 8.507059e+37
    %v37 = vand.u32 %v24, 2147483648
    %v38 = vor.u32 1.1754944e-38, %v37
    %v39 = vsel %vm36, %v38, %v34
    %v40 = vrcp.pop %v25
    %v41 = vmul.f32 %v25, %v40
    %v42 = vsub.f32 1.0, %v41
    %v43 = vmul.f32 %v40, %v42
    %v44 = vadd.f32 %v40, %v43
    %vm45 = vweird.f32 %v25
    %vm46 = vweird.f32 %v40
    %vm47 = vmor %vm45, %vm46
    %v48 = vsel %vm47, %v40, %v44
    %v49 = vand.u32 2147483647, %v25
    %vm50 = vcmp.eq.f32.partialorder %v49, 8.507059e+37
    %v51 = vand.u32 %v25, 2147483648
    %v52 = vor.u32 1.1754944e-38, %v51
    %v53 = vsel %vm50, %v52, %v48
    %v54 = vadd.f32 %v21, 1e-09
    %v55 = vrcp.pop %v54
    %v56 = vmul.f32 %v54, %v55
    %v57 = vsub.f32 1.0, %v56
    %v58 = vmul.f32 %v55, %v57
    %v59 = vadd.f32 %v55, %v58
    %vm60 = vweird.f32 %v54
    %vm61 = vweird.f32 %v55
    %vm62 = vmor %vm60, %vm61
    %v63 = vsel %vm62, %v55, %v59
    %v64 = vand.u32 2147483647, %v54
    %vm65 = vcmp.eq.f32.partialorder %v64, 8.507059e+37
    %v66 = vand.u32 %v54, 2147483648
    %v67 = vor.u32 1.1754944e-38, %v66
    %v68 = vsel %vm65, %v67, %v63
    %70 = vset.pattern.permute.xlu0 0
    %71 = vperm.xlu0 %70, %v39
    %v72 = vpop.permute.xlu0 %71
    %75 = vset.pattern.permute.xlu0 0
    %76 = vperm.xlu0 %75, %v53
    %v77 = vpop.permute.xlu0 %76
    %v79 = vmul.f32 %v15, %v72
    %v80 = vmul.f32 %v16, %v77
    %v82 = vperm.slane %v68, 0
    %v84 = vmul.f32 %v79, %v82
    %v85 = vmul.f32 %v80, %v82
    %v86 = vsub.f32 0.0, %v84
    %v87 = vsub.f32 0.0, %v85
    %v88 = vmul.f32 %v86, 1.442695
    %v89 = vpow.pop %v88
    %v90 = vmul.f32 %v87, 1.442695
    %v91 = vpow.pop %v90
    %v92 = vsub.f32 1.0, %v89
    %v93 = vsub.f32 1.0, %v91
    %v94 = vmul.f32 %v92, %v17
    %v95 = vmul.f32 %v93, %v18
    %vm96 = vcmask 64512
    %v97 = vsel %vm96, %v94, 0.0
    %v98 = vsel %vm96, %v95, 0.0
    %v99 = vadd.f32 %v97, %v98
    %100 = vadd.xlane.f32.xlu0 %v99
    %v101 = vpop.xlane.xlu0 %100
    %v102 = vrot.slane %v101, 4
    %v103 = vadd.f32 %v101, %v102
    %v104 = vrot.slane %v103, 2
    %v105 = vadd.f32 %v103, %v104
    %v106 = vrot.slane %v105, 1
    %v107 = vadd.f32 %v105, %v106
    %s108 = vtos %v107
    %vm109 = vcmp.ne.f32.partialorder %v17, 0.0
    %vm110 = vcmp.ne.f32.partialorder %v18, 0.0
    %v111 = vsel %vm109, 1, 0
    %v112 = vsel %vm110, 1, 0
    %v113 = vcvt.s32.f32 %v111
    %v114 = vcvt.s32.f32 %v112
    %v115 = vsel %vm96, %v113, 0.0
    %v116 = vsel %vm96, %v114, 0.0
    %v117 = vadd.f32 %v115, %v116
    %118 = vadd.xlane.f32.xlu0 %v117
    %v119 = vpop.xlane.xlu0 %118
    %v120 = vrot.slane %v119, 4
    %v121 = vadd.f32 %v119, %v120
    %v122 = vrot.slane %v121, 2
    %v123 = vadd.f32 %v121, %v122
    %v124 = vrot.slane %v123, 1
    %v125 = vadd.f32 %v123, %v124
    %s126 = vtos %v125
    %v127 = vstv %s108
    %128 = vst [vmem:[#allocation2] sm:$0xff] %v127
    %v129 = vstv %s126
    %s130 = scalar_lea.vmem [#allocation2], 8
    %131 = vst [vmem:[%s130] sm:$0xff] %v129
    // Predicated region
    $region14: #{tpu_custom_call.1} parent=1 // pred_check
      _
    $region15: #{tpu_custom_call.1} parent=1 // pred_check_branch
      %133 = sbr.rel (0) target = $region17
    $region16: #{tpu_custom_call.1} parent=1 // pred_region
      %135 = vsyncadd [#allocation3], 0
      %s136 = sshll.u32 [#allocation2], 4
      %s137 = int_to_ptr.vmem [resolvable:$true] %s136
      %s138 = sshll.u32 %s3, 4
      %s139 = int_to_ptr.hbm [resolvable:$true] %s138
      %144 = dma.vmem_to_hbm [thread:$0]  %s137, 256, %s139, [#allocation3], 128, 128, 8
    $region17: #{tpu_custom_call.1} parent=1 // pred_fallthru
      _
    // Predicated region
    $region18: #{tpu_custom_call.1} parent=1 // pred_check
      _
    $region19: #{tpu_custom_call.1} parent=1 // pred_check_branch
      %146 = sbr.rel (0) target = $region21
    $region20: #{tpu_custom_call.1} parent=1 // pred_region
      %148 = dma.done [#allocation3], 256
    $region21: #{tpu_custom_call.1} parent=1 // pred_fallthru
      _
    %149 = vsyncpa [#allocation3], 1

</llo_original>
